<compile_context>
chip_gen: v6e
topology: v6e:2x2x1
jax: 0.10.0
libtpu: 0.0.40
codegen_flags: <defaults>
</compile_context>

<pallas_src>
import functools

import jax
import jax.numpy as jnp
from jax import lax
from jax.experimental import pallas as pl
from jax.experimental.pallas import tpu as pltpu


def _round_up(x, m):
    return ((x + m - 1) // m) * m


# --------------------------------------------------------------------------- #
# Stage 1: streaming sum over the sequence axis of the flattened (S, B*2H) view.
# --------------------------------------------------------------------------- #
def _seq_sum_kernel(enc_ref, sum_ref, *, seq_len, tile_s, needs_mask):
    s = pl.program_id(1)

    @pl.when(s == 0)
    def _():
        sum_ref[...] = jnp.zeros_like(sum_ref)

    if not needs_mask:
        # Pure load + add on every tile of the stream.
        sum_ref[...] += jnp.sum(
            enc_ref[...].astype(jnp.float32), axis=0, keepdims=True
        )
    else:
        last = pl.num_programs(1) - 1

        @pl.when(s != last)
        def _():
            sum_ref[...] += jnp.sum(
                enc_ref[...].astype(jnp.float32), axis=0, keepdims=True
            )

        @pl.when(s == last)
        def _():
            # Only the final (partial) S tile pays for the boundary mask.
            enc = enc_ref[...].astype(jnp.float32)
            valid = seq_len % tile_s  # static, > 0 because needs_mask
            row = lax.broadcasted_iota(jnp.int32, enc.shape, 0)
            enc = jnp.where(row < valid, enc, 0.0)
            sum_ref[...] += jnp.sum(enc, axis=0, keepdims=True)


# --------------------------------------------------------------------------- #
# Stage 2: tiny tanh-MLP head on the (B, 2H) mean, fused mu/log_var output.
# --------------------------------------------------------------------------- #
def _prior_head_kernel(sum_ref, w1_ref, b1_ref, wh_ref, bh_ref, out_ref, *, inv_seq):
    h_src = sum_ref[...] * jnp.float32(inv_seq)                       # (tB, 2H)
    h_z = jnp.tanh(
        jnp.dot(h_src, w1_ref[...], preferred_element_type=jnp.float32)
        + b1_ref[...]
    )                                                                  # (tB, L)
    out_ref[...] = (
        jnp.dot(h_z, wh_ref[...], preferred_element_type=jnp.float32)
        + bh_ref[...]
    ).astype(out_ref.dtype)                                            # (tB, 2L)


def prior_forward(encoded_src, params, *, vmem_tile_bytes=8 * 1024 * 1024):
    """encoded_src: (S, B, 2*hidden) time-major.  Returns (mu, log_var), each (B, L)."""
    w1, b1, wmu, bmu, wvar, bvar = params
    S, B, twoH = encoded_src.shape
    L = w1.shape[1]
    F = B * twoH
    itemsize = encoded_src.dtype.itemsize

    # Lane-dense, contiguous view of the stream.
    enc_flat = encoded_src.reshape(S, F)

    # ---- tile sizing (accounts for 128-lane / 8-sublane VMEM padding) ----
    budget = min(int(vmem_tile_bytes), 12 * 1024 * 1024)  # per pipeline buffer
    if F <= 128 or F * itemsize < 4096:
        tF = F  # single, fully contiguous row tile
    else:
        # >= 2 "parallel" F tiles for v7x megacore, rows still large & contiguous.
        tF = min(_round_up(F, 128), _round_up(pl.cdiv(F, 2), 128))
        max_tf = max(128, ((budget // (8 * itemsize)) // 128) * 128)
        tF = min(tF, max_tf)
    tF_pad = max(128, _round_up(min(tF, F), 128))

    tS = budget // (tF_pad * itemsize)
    tS = max(8, (tS // 8) * 8)
    if tS >= S:
        tS = S
    needs_mask = (S % tS) != 0

    grid = (pl.cdiv(F, tF), pl.cdiv(S, tS))

    sum_kernel = functools.partial(
        _seq_sum_kernel, seq_len=S, tile_s=tS, needs_mask=needs_mask
    )

    reduce_cost = pl.CostEstimate(
        flops=int(S * F),
        transcendentals=0,
        bytes_accessed=int(S * F * itemsize + F * 4),
    )

    sums = pl.pallas_call(
        sum_kernel,
        out_shape=jax.ShapeDtypeStruct((1, F), jnp.float32),
        grid=grid,
        in_specs=[pl.BlockSpec((tS, tF), lambda f, s: (s, f))],
        out_specs=pl.BlockSpec((1, tF), lambda f, s: (0, f)),
        compiler_params=pltpu.CompilerParams(
            dimension_semantics=("parallel", "arbitrary"),
            vmem_limit_bytes=32 * 1024 * 1024,
        ),
        cost_estimate=reduce_cost,
    )(enc_flat)

    # (1, B*2H) -> (B, 2H): tiny, free relayout outside the streaming kernel.
    h_sum = sums.reshape(B, twoH)

    # Fuse the two heads: (L, 2L) weight, (1, 2L) bias -> one lane-dense output.
    wh = jnp.concatenate([wmu, wvar], axis=1)
    bh = jnp.concatenate([bmu, bvar]).reshape(1, 2 * L)
    b1r = b1.reshape(1, L)

    tB = B if B <= 1024 else 1024
    head_kernel = functools.partial(_prior_head_kernel, inv_seq=1.0 / S)

    head_cost = pl.CostEstimate(
        flops=int(2 * B * (twoH * L + L * 2 * L)),
        transcendentals=int(B * L),
        bytes_accessed=int(
            B * twoH * 4 + (twoH * L + L + 2 * L * L + 2 * L) * 4 + B * 2 * L * 4
        ),
    )

    out = pl.pallas_call(
        head_kernel,
        out_shape=jax.ShapeDtypeStruct((B, 2 * L), jnp.float32),
        grid=(pl.cdiv(B, tB),),
        in_specs=[
            pl.BlockSpec((tB, twoH), lambda i: (i, 0)),    # sequence sums
            pl.BlockSpec((twoH, L), lambda i: (0, 0)),     # W1      (resident)
            pl.BlockSpec((1, L), lambda i: (0, 0)),        # b1
            pl.BlockSpec((L, 2 * L), lambda i: (0, 0)),    # [Wmu | Wvar]
            pl.BlockSpec((1, 2 * L), lambda i: (0, 0)),    # [bmu | bvar]
        ],
        out_specs=pl.BlockSpec((tB, 2 * L), lambda i: (i, 0)),
        compiler_params=pltpu.CompilerParams(
            dimension_semantics=("parallel",),
        ),
        cost_estimate=head_cost,
    )(h_sum, w1, b1r, wh, bh)

    return out[:, :L], out[:, L:]


def init_prior_params(key, hidden_size, latent_size):
    """Deterministic synthetic parameters (same shapes as the torch module).
    Weights are stored transposed: (in_features, out_features)."""
    k1, k2, k3, k4, k5, k6 = jax.random.split(key, 6)
    in1 = 2 * hidden_size
    w1 = jax.random.normal(k1, (in1, latent_size), jnp.float32) * (1.0 / jnp.sqrt(in1))
    b1 = jax.random.normal(k2, (latent_size,), jnp.float32) * 0.01
    wmu = jax.random.normal(k3, (latent_size, latent_size), jnp.float32) * (
        1.0 / jnp.sqrt(latent_size)
    )
    bmu = jax.random.normal(k4, (latent_size,), jnp.float32) * 0.01
    wvar = jax.random.normal(k5, (latent_size, latent_size), jnp.float32) * (
        1.0 / jnp.sqrt(latent_size)
    )
    bvar = jax.random.normal(k6, (latent_size,), jnp.float32) * 0.01
    return (w1, b1, wmu, bmu, wvar, bvar)


def prior_forward_ref(encoded_src, params):
    """Pure-JAX reference mirroring the PyTorch forward exactly."""
    w1, b1, wmu, bmu, wvar, bvar = params
    enc = jnp.transpose(encoded_src, (1, 0, 2))          # (B, S, 2H)
    h_src = jnp.mean(enc, axis=1)                        # avg_pool1d over full length
    h_z = jnp.tanh(h_src @ w1 + b1)
    mu = h_z @ wmu + bmu
    log_var = h_z @ wvar + bvar
    return mu, log_var


if __name__ == "__main__":
    hidden_size = 16
    latent_size = 32
    seq_len = 8
    batch = 2

    key = jax.random.PRNGKey(0)
    k_src, k_enc, k_params = jax.random.split(key, 3)

    # src is unused by the forward pass (kept for interface parity)
    src = jax.random.randint(k_src, (seq_len, batch), 0, 100)
    encoded_src = jax.random.normal(
        k_enc, (seq_len, batch, 2 * hidden_size), jnp.float32
    )

    params = init_prior_params(k_params, hidden_size, latent_size)

    mu, log_var = prior_forward(encoded_src, params)
    jax.block_until_ready((mu, log_var))

    mu_ref, log_var_ref = prior_forward_ref(encoded_src, params)
    assert mu.shape == (batch, latent_size) and log_var.shape == (batch, latent_size)
    assert jnp.allclose(mu, mu_ref, atol=1e-5, rtol=1e-5)
    assert jnp.allclose(log_var, log_var_ref, atol=1e-5, rtol=1e-5)

    print("KERNEL_OK")
</pallas_src>

<mosaic_0001>
module attributes {stable_mosaic.version = 11 : i64} {
  func.func @_seq_sum_kernel(%arg0: i32, %arg1: i32, %arg2: memref<8x64xf32, #tpu.memory_space<vmem>>, %arg3: memref<1x64xf32, #tpu.memory_space<vmem>>) attributes {dimension_semantics = [#tpu.dimension_semantics<parallel>, #tpu.dimension_semantics<arbitrary>], iteration_bounds = array<i64: 1, 1>, scalar_prefetch = 0 : i64, scratch_operands = 0 : i64, tpu.core_type = #tpu.core_type<tc>, window_params = [{transform_indices = @transform_0, window_bounds = array<i64: 8, 64>}, {transform_indices = @transform_1, window_bounds = array<i64: 1, 64>}]} {
    %c0_i32 = arith.constant 0 : i32
    %0 = arith.cmpi eq, %arg1, %c0_i32 : i32
    %1 = arith.extui %0 : i1 to i32
    %c0_i32_0 = arith.constant 0 : i32
    %2 = arith.cmpi ne, %1, %c0_i32_0 : i32
    scf.if %2 {
      %cst_6 = arith.constant 0.000000e+00 : f32
      %9 = vector.broadcast %cst_6 : f32 to vector<1x64xf32>
      %c0_7 = arith.constant 0 : index
      %c0_8 = arith.constant 0 : index
      %10 = vector.load %arg3[%c0_7, %c0_8] : memref<1x64xf32, #tpu.memory_space<vmem>>, vector<1x64xf32>
      tpu.vector_store %arg3[%c0_7, %c0_8], %9 {strides = array<i32>} : memref<1x64xf32, #tpu.memory_space<vmem>>, vector<1x64xf32>,
    } else {
    }
    %c0 = arith.constant 0 : index
    %c0_1 = arith.constant 0 : index
    %3 = vector.load %arg3[%c0, %c0_1] : memref<1x64xf32, #tpu.memory_space<vmem>>, vector<1x64xf32>
    %c0_2 = arith.constant 0 : index
    %c0_3 = arith.constant 0 : index
    %4 = vector.load %arg2[%c0_2, %c0_3] : memref<8x64xf32, #tpu.memory_space<vmem>>, vector<8x64xf32>
    %cst = arith.constant dense<0.000000e+00> : vector<64xf32>
    %5 = vector.multi_reduction <add>, %4, %cst [0] : vector<8x64xf32> to vector<64xf32>
    %6 = vector.shape_cast %5 : vector<64xf32> to vector<1x64xf32>
    %7 = arith.addf %3, %6 : vector<1x64xf32>
    %c0_4 = arith.constant 0 : index
    %c0_5 = arith.constant 0 : index
    %8 = vector.load %arg3[%c0_4, %c0_5] : memref<1x64xf32, #tpu.memory_space<vmem>>, vector<1x64xf32>
    tpu.vector_store %arg3[%c0_4, %c0_5], %7 {strides = array<i32>} : memref<1x64xf32, #tpu.memory_space<vmem>>, vector<1x64xf32>,
    return
  }
  func.func @transform_0(%arg0: i32, %arg1: i32) -> (i32, i32) {
    %c0_i32 = arith.constant 0 : i32
    return %arg1, %arg0 : i32, i32
  }
  func.func @transform_1(%arg0: i32, %arg1: i32) -> (i32, i32) {
    %c0_i32 = arith.constant 0 : i32
    %c0_i32_0 = arith.constant 0 : i32
    return %c0_i32, %arg0 : i32, i32
  }
}

</mosaic_0001>

<llo_original>
// kernel: tpu_custom_call.1
$region0: #{tpu_custom_call.1}
  #allocation0 [shape = 'u32[]', space=smem, size = 0x4, offset = 0x4, fixed_abs, tag = 'smem constant byte address 0x4 - core index']
  #allocation1 [shape = 'u32[144,128]{1,0:T(1,128)}', space=vmem, size = 0x12000, scoped, tag = 'internal scratch']
  %s0 = inlined_call_operand.hbm [shape: f32[8,64], index: 0, kind: input, shape index: {}]
  %s1 = inlined_call_operand.hbm [shape: f32[1,64], index: 1, kind: output, shape index: {}]
  %s2 = sld [smem:[#allocation0]]
  $region22: #{tpu_custom_call.1} parent=0
    _
  %s4 = ssub.s32 1, %s2
  %s5 = scalar_select 0, %s4, %s2
  $region1: #{tpu_custom_call.1} parent=0
    #allocation2 [shape = 'u8[4096]{0}', space=vmem, size = 0x1000, scoped, tag = 'input window, operand 0, single buffered']
    #allocation3 [shape = 's32[1]{0}', space=sflag, size = 0x4, scoped, tag = 'scoped memory for tpu_custom_call.1']
    #allocation4 [shape = 's32[1]{0}', space=sflag, size = 0x4, scoped, tag = 'scoped memory for tpu_custom_call.1']
    #allocation5 [shape = 'u8[512]{0}', space=vmem, size = 0x400, scoped, tag = 'output window, operand 0, single buffered']
    %6 = vsyncpa [#allocation3], 0
    %7 = vsyncpa [#allocation4], 0
    // Predicated region
    $region2: #{tpu_custom_call.1} parent=1 // pred_check
      _
    $region3: #{tpu_custom_call.1} parent=1 // pred_check_branch
      %9 = sbr.rel (0) target = $region5
    $region4: #{tpu_custom_call.1} parent=1 // pred_region
      %s11 = ssub.s32 128, 128
      %12 = vsyncadd [#allocation3], %s11
      %s14 = sshll.u32 [#allocation2], 4
      %s15 = int_to_ptr.vmem [resolvable:$true] %s14
      %17 = dma.hbm_to_vmem [thread:$0]  %s0, 128, %s15, [#allocation3]
    $region5: #{tpu_custom_call.1} parent=1 // pred_fallthru
      _
    // Predicated region
    $region6: #{tpu_custom_call.1} parent=1 // pred_check
      _
    $region7: #{tpu_custom_call.1} parent=1 // pred_check_branch
      %19 = sbr.rel (0) target = $region9
    $region8: #{tpu_custom_call.1} parent=1 // pred_region
      %20 = dma.done [#allocation3], 128
    $region9: #{tpu_custom_call.1} parent=1 // pred_fallthru
      _
    %p21 = scmp.eq.s32.totalorder 0, 0
    // Predicated region
    $region10: #{tpu_custom_call.1} parent=1 // pred_check
      %p22 = pneg %p21
    $region11: #{tpu_custom_call.1} parent=1 // pred_check_branch
      %24 = sbr.rel (%p22) target = $region13
    $region12: #{tpu_custom_call.1} parent=1 // pred_region
      %vm25 = vcmask 516096
      %26 = vst.msk [vmem:[#allocation5] sm:$0x1] %vm25, 0.0
    $region13: #{tpu_custom_call.1} parent=1 // pred_fallthru
      _
    %v27 = vld [vmem:[#allocation5] sm:$0x1]
    %v28 = vld [vmem:[#allocation2] sm:$0xff]
    %vm29 = vcmask 523264
    %v30 = vsel %vm29, %v28, 0.0
    %v31 = vrot.slane %v30, 4
    %v32 = vadd.f32 %v30, %v31
    %v33 = vrot.slane %v32, 2
    %v34 = vadd.f32 %v32, %v33
    %v35 = vrot.slane %v34, 1
    %v36 = vadd.f32 %v34, %v35
    %v37 = vadd.f32 %v27, %v36
    %vm38 = vcmask 516096
    %39 = vst.msk [vmem:[#allocation5] sm:$0x1] %vm38, %v37
    // Predicated region
    $region14: #{tpu_custom_call.1} parent=1 // pred_check
      _
    $region15: #{tpu_custom_call.1} parent=1 // pred_check_branch
      %41 = sbr.rel (0) target = $region17
    $region16: #{tpu_custom_call.1} parent=1 // pred_region
      %s43 = ssub.s32 16, 16
      %44 = vsyncadd [#allocation4], %s43
      %s46 = sshll.u32 [#allocation5], 4
      %s47 = int_to_ptr.vmem [resolvable:$true] %s46
      %49 = dma.vmem_to_hbm [thread:$0]  %s47, 16, %s1, [#allocation4]
    $region17: #{tpu_custom_call.1} parent=1 // pred_fallthru
      _
    // Predicated region
    $region18: #{tpu_custom_call.1} parent=1 // pred_check
      _
    $region19: #{tpu_custom_call.1} parent=1 // pred_check_branch
      %51 = sbr.rel (0) target = $region21
    $region20: #{tpu_custom_call.1} parent=1 // pred_region
      %52 = dma.done [#allocation4], 16
    $region21: #{tpu_custom_call.1} parent=1 // pred_fallthru
      _
    %53 = vsyncpa [#allocation3], 1
    %54 = vsyncpa [#allocation4], 1

</llo_original>
